<compile_context>
chip_gen: v7x
topology: tpu7x:2x2x1
jax: 0.10.0
libtpu: 0.0.40
codegen_flags: <defaults>
</compile_context>

<pallas_src>
import functools

import jax
import jax.numpy as jnp
from jax.experimental import pallas as pl
from jax.experimental.pallas import tpu as pltpu

LANES = 128
MAX_TILE_B = 32768  # rows per grid step ceiling (still only ~MBs of VMEM)


def _round_up(x: int, m: int) -> int:
    return (x + m - 1) // m * m


def _detect_num_cores() -> int:
    """Best-effort TensorCores-per-chip (v5e/v6e: 1, v7x: 2)."""
    try:
        dev = jax.devices()[0]
        n = getattr(dev, "num_cores", None)
        if n is not None and int(n) >= 1:
            return int(n)
        kind = str(getattr(dev, "device_kind", "") or "").lower()
        if "v7" in kind or "7x" in kind:
            return 2
    except Exception:
        pass
    return 1


def init_params(key, input_features, output_features, hidden_units):
    """nn.Linear-style init: W [out, in], b [out], uniform(-1/sqrt(fan_in), +)."""
    dims = [(hidden_units, input_features),
            (hidden_units, hidden_units),
            (hidden_units, hidden_units),
            (output_features, hidden_units)]
    params = {}
    for idx, (fan_out, fan_in) in enumerate(dims, start=1):
        key, kw, kb = jax.random.split(key, 3)
        bound = 1.0 / jnp.sqrt(jnp.float32(fan_in))
        params[f"w{idx}"] = jax.random.uniform(
            kw, (fan_out, fan_in), jnp.float32, minval=-bound, maxval=bound)
        params[f"b{idx}"] = jax.random.uniform(
            kb, (fan_out,), jnp.float32, minval=-bound, maxval=bound)
    return params


def _pack_param_slab(params, F, H, O):
    """Pack all weights/biases into one (8,128)-aligned f32 slab.

    Row layout (HP = roundup(H,8), OP = roundup(O,8)):
      rows [0      , HP)      cols [0, FP): W1 [H, F]   col bias_col: b1
      rows [HP     , 2*HP)    cols [0, HP): W2 [H, H]   col bias_col: b2
      rows [2*HP   , 3*HP)    cols [0, HP): W3 [H, H]   col bias_col: b3
      rows [3*HP   , 3*HP+OP) cols [0, HP): W4 [O, H]   col bias_col: b4
    Unused entries are zero, so padded rows/cols contribute nothing.
    """
    FP, HP, OP = (_round_up(d, 8) for d in (F, H, O))
    r1, r2, r3, r4 = 0, HP, 2 * HP, 3 * HP
    n_rows = 3 * HP + OP
    bias_col = max(FP, HP)

    slab = jnp.zeros((n_rows, LANES), jnp.float32)
    slab = slab.at[r1:r1 + H, 0:F].set(params["w1"])
    slab = slab.at[r2:r2 + H, 0:H].set(params["w2"])
    slab = slab.at[r3:r3 + H, 0:H].set(params["w3"])
    slab = slab.at[r4:r4 + O, 0:H].set(params["w4"])
    slab = slab.at[r1:r1 + H, bias_col].set(params["b1"])
    slab = slab.at[r2:r2 + H, bias_col].set(params["b2"])
    slab = slab.at[r3:r3 + H, bias_col].set(params["b3"])
    slab = slab.at[r4:r4 + O, bias_col].set(params["b4"])
    return slab, (FP, HP, OP, r1, r2, r3, r4, n_rows, bias_col)


def _spiral_mlp_kernel(x_ref, slab_ref, o_ref, *, FP, HP, OP,
                       r1, r2, r3, r4, bias_col):
    """Fused 4-layer MLP on a transposed tile: x [FP, TB] -> out [OP, TB].

    Weights/biases are read with static Ref-level slices (zero-cost views, no
    whole-slab load + value-slice relayout).  All matmuls are W @ x on the MXU
    with f32 accumulation; bias add broadcasts over the lane/batch axis and
    ReLU runs on the VPU with full lane utilization.
    """
    xb = x_ref[...]                                               # [FP, TB]

    w1 = slab_ref[r1:r1 + HP, 0:FP]
    b1 = slab_ref[r1:r1 + HP, bias_col:bias_col + 1]
    w2 = slab_ref[r2:r2 + HP, 0:HP]
    b2 = slab_ref[r2:r2 + HP, bias_col:bias_col + 1]
    w3 = slab_ref[r3:r3 + HP, 0:HP]
    b3 = slab_ref[r3:r3 + HP, bias_col:bias_col + 1]
    w4 = slab_ref[r4:r4 + OP, 0:HP]
    b4 = slab_ref[r4:r4 + OP, bias_col:bias_col + 1]

    h = jnp.maximum(jnp.dot(w1, xb, preferred_element_type=jnp.float32) + b1, 0.0)
    h = jnp.maximum(jnp.dot(w2, h, preferred_element_type=jnp.float32) + b2, 0.0)
    h = jnp.maximum(jnp.dot(w3, h, preferred_element_type=jnp.float32) + b3, 0.0)
    out = jnp.dot(w4, h, preferred_element_type=jnp.float32) + b4
    o_ref[...] = out.astype(o_ref.dtype)


def spiral_model_forward(x, params, *, tile_b=None, num_cores=None):
    """SpiralModel forward pass.  x: [N, input_features] f32 -> [N, output_features].

    tile_b: batch rows per grid step (multiple of 128).  By default, one fat
    tile per TensorCore (1 grid step on v5e/v6e, 2 on v7x), capped at
    MAX_TILE_B rows for very large batches.
    """
    N, F = x.shape
    H = params["w2"].shape[0]
    O = params["w4"].shape[0]

    slab, (FP, HP, OP, r1, r2, r3, r4, n_rows, bias_col) = _pack_param_slab(
        params, F, H, O)

    if num_cores is None:
        num_cores = _detect_num_cores()
    if tile_b is None:
        n128 = _round_up(N, LANES)
        per_core = _round_up(-(-n128 // max(num_cores, 1)), LANES)
        tile_b = min(per_core, MAX_TILE_B)
    assert tile_b % LANES == 0, "tile_b must be a multiple of 128 (lane width)"

    n_pad = _round_up(N, tile_b)
    grid = (n_pad // tile_b,)

    # Single fusible pad on the transposed view (no zeros+scatter, no extra
    # HBM round trip of x).
    x_t = jnp.pad(x.T, ((0, FP - F), (0, n_pad - N)))

    kernel = functools.partial(
        _spiral_mlp_kernel, FP=FP, HP=HP, OP=OP,
        r1=r1, r2=r2, r3=r3, r4=r4, bias_col=bias_col)

    cost = pl.CostEstimate(
        flops=2 * n_pad * (HP * FP + HP * HP + HP * HP + OP * HP),
        transcendentals=0,
        bytes_accessed=4 * (FP * n_pad + OP * n_pad + n_rows * LANES))

    out_t = pl.pallas_call(
        kernel,
        out_shape=jax.ShapeDtypeStruct((OP, n_pad), jnp.float32),
        grid_spec=pltpu.PrefetchScalarGridSpec(
            num_scalar_prefetch=0,
            grid=grid,
            in_specs=[
                pl.BlockSpec((FP, tile_b), lambda i: (0, i)),         # x batch tile
                pl.BlockSpec((n_rows, LANES), lambda i: (0, 0)),      # packed params
            ],
            out_specs=pl.BlockSpec((OP, tile_b), lambda i: (0, i)),
        ),
        compiler_params=pltpu.CompilerParams(
            dimension_semantics=("parallel",)),
        cost_estimate=cost,
    )(x_t, slab)

    # Strip padding, return torch-style [N, O] (one tiny fused slice+transpose).
    return out_t[:O, :N].T


def reference_forward(x, params):
    h = jnp.maximum(x @ params["w1"].T + params["b1"], 0.0)
    h = jnp.maximum(h @ params["w2"].T + params["b2"], 0.0)
    h = jnp.maximum(h @ params["w3"].T + params["b3"], 0.0)
    return h @ params["w4"].T + params["b4"]


if __name__ == "__main__":
    # Spiral classification shapes: 2 input coords -> 3 classes, hidden=8.
    INPUT_FEATURES = 2
    OUTPUT_FEATURES = 3
    HIDDEN_UNITS = 8
    BATCH = 1000          # not a tile multiple -> exercises remainder padding

    key = jax.random.PRNGKey(0)
    key, kx = jax.random.split(key)
    x = jax.random.normal(kx, (BATCH, INPUT_FEATURES), dtype=jnp.float32)
    params = init_params(key, INPUT_FEATURES, OUTPUT_FEATURES, HIDDEN_UNITS)

    fwd = jax.jit(spiral_model_forward)
    out = jax.block_until_ready(fwd(x, params))

    ref = reference_forward(x, params)
    assert out.shape == (BATCH, OUTPUT_FEATURES)
    assert jnp.allclose(out, ref, atol=1e-4, rtol=1e-4), \
        f"max abs err {jnp.max(jnp.abs(out - ref))}"

    print("KERNEL_OK")
</pallas_src>

<mosaic_0001>
module attributes {stable_mosaic.version = 11 : i64} {
  func.func @_spiral_mlp_kernel(%arg0: i32, %arg1: memref<8x1024xf32, #tpu.memory_space<vmem>>, %arg2: memref<32x128xf32, #tpu.memory_space<vmem>>, %arg3: memref<8x1024xf32, #tpu.memory_space<vmem>>) attributes {dimension_semantics = [#tpu.dimension_semantics<parallel>], iteration_bounds = array<i64: 1>, scalar_prefetch = 0 : i64, scratch_operands = 0 : i64, tpu.core_type = #tpu.core_type<tc>, window_params = [{transform_indices = @transform_0, window_bounds = array<i64: 8, 1024>}, {pipeline_mode = #tpu.pipeline_mode<synchronous>, transform_indices = @transform_1, window_bounds = array<i64: 32, 128>}, {transform_indices = @transform_2, window_bounds = array<i64: 8, 1024>}]} {
    %c0 = arith.constant 0 : index
    %c0_0 = arith.constant 0 : index
    %0 = vector.load %arg1[%c0, %c0_0] : memref<8x1024xf32, #tpu.memory_space<vmem>>, vector<8x1024xf32>
    %c0_1 = arith.constant 0 : index
    %c0_2 = arith.constant 0 : index
    %1 = vector.load %arg2[%c0_1, %c0_2] : memref<32x128xf32, #tpu.memory_space<vmem>>, vector<8x8xf32>
    %c0_3 = arith.constant 0 : index
    %c8 = arith.constant 8 : index
    %2 = vector.load %arg2[%c0_3, %c8] : memref<32x128xf32, #tpu.memory_space<vmem>>, vector<8x1xf32>
    %c8_4 = arith.constant 8 : index
    %c0_5 = arith.constant 0 : index
    %3 = vector.load %arg2[%c8_4, %c0_5] : memref<32x128xf32, #tpu.memory_space<vmem>>, vector<8x8xf32>
    %c8_6 = arith.constant 8 : index
    %c8_7 = arith.constant 8 : index
    %4 = vector.load %arg2[%c8_6, %c8_7] : memref<32x128xf32, #tpu.memory_space<vmem>>, vector<8x1xf32>
    %c16 = arith.constant 16 : index
    %c0_8 = arith.constant 0 : index
    %5 = vector.load %arg2[%c16, %c0_8] : memref<32x128xf32, #tpu.memory_space<vmem>>, vector<8x8xf32>
    %c16_9 = arith.constant 16 : index
    %c8_10 = arith.constant 8 : index
    %6 = vector.load %arg2[%c16_9, %c8_10] : memref<32x128xf32, #tpu.memory_space<vmem>>, vector<8x1xf32>
    %c24 = arith.constant 24 : index
    %c0_11 = arith.constant 0 : index
    %7 = vector.load %arg2[%c24, %c0_11] : memref<32x128xf32, #tpu.memory_space<vmem>>, vector<8x8xf32>
    %c24_12 = arith.constant 24 : index
    %c8_13 = arith.constant 8 : index
    %8 = vector.load %arg2[%c24_12, %c8_13] : memref<32x128xf32, #tpu.memory_space<vmem>>, vector<8x1xf32>
    %cst = arith.constant dense<0.000000e+00> : vector<8x1024xf32>
    %9 = tpu.matmul %1, %0, %cst {dimension_numbers = #tpu.dot_dimension_numbers<[1], [0], [0], [1], [0, 0, 1, 1], [], []>} : vector<8x8xf32>, vector<8x1024xf32>, vector<8x1024xf32> -> vector<8x1024xf32>
    %10 = vector.broadcast %2 : vector<8x1xf32> to vector<8x1024xf32>
    %11 = arith.addf %9, %10 : vector<8x1024xf32>
    %cst_14 = arith.constant 0.000000e+00 : f32
    %12 = vector.broadcast %cst_14 : f32 to vector<8x1024xf32>
    %13 = arith.maximumf %11, %12 : vector<8x1024xf32>
    %cst_15 = arith.constant dense<0.000000e+00> : vector<8x1024xf32>
    %14 = tpu.matmul %3, %13, %cst_15 {dimension_numbers = #tpu.dot_dimension_numbers<[1], [0], [0], [1], [0, 0, 1, 1], [], []>} : vector<8x8xf32>, vector<8x1024xf32>, vector<8x1024xf32> -> vector<8x1024xf32>
    %15 = vector.broadcast %4 : vector<8x1xf32> to vector<8x1024xf32>
    %16 = arith.addf %14, %15 : vector<8x1024xf32>
    %cst_16 = arith.constant 0.000000e+00 : f32
    %17 = vector.broadcast %cst_16 : f32 to vector<8x1024xf32>
    %18 = arith.maximumf %16, %17 : vector<8x1024xf32>
    %cst_17 = arith.constant dense<0.000000e+00> : vector<8x1024xf32>
    %19 = tpu.matmul %5, %18, %cst_17 {dimension_numbers = #tpu.dot_dimension_numbers<[1], [0], [0], [1], [0, 0, 1, 1], [], []>} : vector<8x8xf32>, vector<8x1024xf32>, vector<8x1024xf32> -> vector<8x1024xf32>
    %20 = vector.broadcast %6 : vector<8x1xf32> to vector<8x1024xf32>
    %21 = arith.addf %19, %20 : vector<8x1024xf32>
    %cst_18 = arith.constant 0.000000e+00 : f32
    %22 = vector.broadcast %cst_18 : f32 to vector<8x1024xf32>
    %23 = arith.maximumf %21, %22 : vector<8x1024xf32>
    %cst_19 = arith.constant dense<0.000000e+00> : vector<8x1024xf32>
    %24 = tpu.matmul %7, %23, %cst_19 {dimension_numbers = #tpu.dot_dimension_numbers<[1], [0], [0], [1], [0, 0, 1, 1], [], []>} : vector<8x8xf32>, vector<8x1024xf32>, vector<8x1024xf32> -> vector<8x1024xf32>
    %25 = vector.broadcast %8 : vector<8x1xf32> to vector<8x1024xf32>
    %26 = arith.addf %24, %25 : vector<8x1024xf32>
    %c0_20 = arith.constant 0 : index
    %c0_21 = arith.constant 0 : index
    %27 = vector.load %arg3[%c0_20, %c0_21] : memref<8x1024xf32, #tpu.memory_space<vmem>>, vector<8x1024xf32>
    tpu.vector_store %arg3[%c0_20, %c0_21], %26 {strides = array<i32>} : memref<8x1024xf32, #tpu.memory_space<vmem>>, vector<8x1024xf32>,
    return
  }
  func.func @transform_0(%arg0: i32) -> (i32, i32) {
    %c0_i32 = arith.constant 0 : i32
    %c0_i32_0 = arith.constant 0 : i32
    return %c0_i32, %arg0 : i32, i32
  }
  func.func @transform_1(%arg0: i32) -> (i32, i32) {
    %c0_i32 = arith.constant 0 : i32
    %c0_i32_0 = arith.constant 0 : i32
    %c0_i32_1 = arith.constant 0 : i32
    return %c0_i32, %c0_i32_0 : i32, i32
  }
  func.func @transform_2(%arg0: i32) -> (i32, i32) {
    %c0_i32 = arith.constant 0 : i32
    %c0_i32_0 = arith.constant 0 : i32
    return %c0_i32, %arg0 : i32, i32
  }
}

</mosaic_0001>

<llo_original>
// kernel: spiral_model_forward.1
$region0: #{spiral_model_forward.1}
  #allocation0 [shape = 'u32[]', space=smem, size = 0x4, offset = 0x4, fixed_abs, tag = 'smem constant byte address 0x4 - core index']
  #allocation1 [shape = 'u32[144,128]{1,0:T(1,128)}', space=vmem, size = 0x12000, scoped, tag = 'internal scratch']
  %s0 = inlined_call_operand.vmem [shape: f32[8,1024], index: 0, kind: input, shape index: {}]
  %s1 = inlined_call_operand.vmem [shape: f32[32,128], index: 1, kind: input, shape index: {}]
  %s2 = inlined_call_operand.vmem [shape: f32[8,1024], index: 2, kind: output, shape index: {}]
  %s3 = sld [smem:[#allocation0]]
  $region18: #{spiral_model_forward.1} parent=0
    _
  %s5 = ssub.s32 1, %s3
  %s6 = scalar_select 0, %s5, %s3
  // Predicated region
  $region2: #{spiral_model_forward.1} parent=0 // pred_check
    _
  $region3: #{spiral_model_forward.1} parent=0 // pred_check_branch
    %8 = sbr.rel (0) target = $region5
  $region4: #{spiral_model_forward.1} parent=0 // pred_region
    _
  $region5: #{spiral_model_forward.1} parent=0 // pred_fallthru
    _
  // Predicated region
  $region6: #{spiral_model_forward.1} parent=0 // pred_check
    _
  $region7: #{spiral_model_forward.1} parent=0 // pred_check_branch
    %10 = sbr.rel (0) target = $region9
  $region8: #{spiral_model_forward.1} parent=0 // pred_region
    _
  $region9: #{spiral_model_forward.1} parent=0 // pred_fallthru
    _
  %v11 = vld [vmem:[%s0] sm:$0xff]
  %v12 = vld [vmem:[%s0 + $0x8] sm:$0xff]
  %v13 = vld [vmem:[%s0 + $0x10] sm:$0xff]
  %v14 = vld [vmem:[%s0 + $0x18] sm:$0xff]
  %v15 = vld [vmem:[%s0 + $0x20] sm:$0xff]
  %v16 = vld [vmem:[%s0 + $0x28] sm:$0xff]
  %v17 = vld [vmem:[%s0 + $0x30] sm:$0xff]
  %v18 = vld [vmem:[%s0 + $0x38] sm:$0xff]
  %v19 = vld [vmem:[%s1] sm:$0xff]
  %v20 = vld [vmem:[%s1 + $0x8] sm:$0xff]
  %v21 = vld [vmem:[%s1 + $0x10] sm:$0xff]
  %v22 = vld [vmem:[%s1 + $0x18] sm:$0xff]
  %24 = vset.pattern.permute.xlu0 8
  %25 = vperm.xlu0 %24, %v19
  %v26 = vpop.permute.xlu0 %25
  %vm28 = vcmask 64512
  %v29 = vsel %vm28, %v19, 0
  %31 = vmatprep.subr.mxu0 %v12
  %32 = vmatpush1.msra.mxu0 %v11
  %33 = vmatprep.subr.mxu0 0.0
  %34 = vmatpush1.msra.mxu0 0.0
  %35 = vmatprep.subr.mxu0 0.0
  %36 = vmatpush1.msra.mxu0 0.0
  %37 = vmatprep.subr.mxu0 0.0
  %38 = vmatpush1.msra.mxu0 0.0
  %39 = vmatprep.subr.mxu0 0.0
  %40 = vmatpush1.msra.mxu0 0.0
  %41 = vmatprep.subr.mxu0 0.0
  %42 = vmatpush1.msra.mxu0 0.0
  %43 = vmatprep.subr.mxu0 0.0
  %44 = vmatpush1.msra.mxu0 0.0
  %45 = vmatprep.subr.mxu0 0.0
  %46 = vmatpush1.msra.mxu0 0.0
  %47 = vmatprep.subr.mxu0 0.0
  %48 = vmatpush1.msra.mxu0 0.0
  %49 = vmatprep.subr.mxu0 0.0
  %50 = vmatpush1.msra.mxu0 0.0
  %51 = vmatprep.subr.mxu0 0.0
  %52 = vmatpush1.msra.mxu0 0.0
  %53 = vmatprep.subr.mxu0 0.0
  %54 = vmatpush1.msra.mxu0 0.0
  %55 = vmatprep.subr.mxu0 0.0
  %56 = vmatpush1.msra.mxu0 0.0
  %57 = vmatprep.subr.mxu0 0.0
  %58 = vmatpush1.msra.mxu0 0.0
  %59 = vmatprep.subr.mxu0 0.0
  %60 = vmatpush1.msra.mxu0 0.0
  %61 = vmatprep.subr.mxu0 0.0
  %62 = vmatpush1.msra.mxu0 0.0
  %63 = vmatprep.subr.mxu0 0.0
  %64 = vmatpush1.msra.mxu0 0.0
  %65 = vmatprep.subr.mxu0 0.0
  %66 = vmatpush1.msra.mxu0 0.0
  %67 = vmatprep.subr.mxu0 0.0
  %68 = vmatpush1.msra.mxu0 0.0
  %69 = vmatprep.subr.mxu0 0.0
  %70 = vmatpush1.msra.mxu0 0.0
  %71 = vmatprep.subr.mxu0 0.0
  %72 = vmatpush1.msra.mxu0 0.0
  %73 = vmatprep.subr.mxu0 0.0
  %74 = vmatpush1.msra.mxu0 0.0
  %75 = vmatprep.subr.mxu0 0.0
  %76 = vmatpush1.msra.mxu0 0.0
  %77 = vmatprep.subr.mxu0 0.0
  %78 = vmatpush1.msra.mxu0 0.0
  %79 = vmatprep.subr.mxu0 0.0
  %80 = vmatpush1.msra.mxu0 0.0
  %81 = vmatprep.subr.mxu0 0.0
  %82 = vmatpush1.msra.mxu0 0.0
  %83 = vmatprep.subr.mxu0 0.0
  %84 = vmatpush1.msra.mxu0 0.0
  %85 = vmatprep.subr.mxu0 0.0
  %86 = vmatpush1.msra.mxu0 0.0
  %87 = vmatprep.subr.mxu0 0.0
  %88 = vmatpush1.msra.mxu0 0.0
  %89 = vmatprep.subr.mxu0 0.0
  %90 = vmatpush1.msra.mxu0 0.0
  %91 = vmatprep.subr.mxu0 0.0
  %92 = vmatpush1.msra.mxu0 0.0
  %93 = vmatprep.subr.mxu0 0.0
  %94 = vmatpush1.msra.mxu0 0.0
  %95 = vmatprep.mubr.f32.mxu0 0.0
  %96 = vmatmul.mubr.f32.gmra.mrb[0].mxu0 %v29
  %v97 = vpop.f32.mrb[0].mxu0
  %v98 = vadd.f32 %v26, %v97
  %v99 = vpop.f32.mrb[0].mxu0
  %v100 = vadd.f32 %v26, %v99
  %101 = vdwg.mxu0
  %102 = vmatprep.subr.mxu0 %v14
  %103 = vmatpush1.msra.mxu0 %v13
  %104 = vmatprep.subr.mxu0 0.0
  %105 = vmatpush1.msra.mxu0 0.0
  %106 = vmatprep.subr.mxu0 0.0
  %107 = vmatpush1.msra.mxu0 0.0
  %108 = vmatprep.subr.mxu0 0.0
  %109 = vmatpush1.msra.mxu0 0.0
  %110 = vmatprep.subr.mxu0 0.0
  %111 = vmatpush1.msra.mxu0 0.0
  %112 = vmatprep.subr.mxu0 0.0
  %113 = vmatpush1.msra.mxu0 0.0
  %114 = vmatprep.subr.mxu0 0.0
  %115 = vmatpush1.msra.mxu0 0.0
  %116 = vmatprep.subr.mxu0 0.0
  %117 = vmatpush1.msra.mxu0 0.0
  %118 = vmatprep.subr.mxu0 0.0
  %119 = vmatpush1.msra.mxu0 0.0
  %120 = vmatprep.subr.mxu0 0.0
  %121 = vmatpush1.msra.mxu0 0.0
  %122 = vmatprep.subr.mxu0 0.0
  %123 = vmatpush1.msra.mxu0 0.0
  %124 = vmatprep.subr.mxu0 0.0
  %125 = vmatpush1.msra.mxu0 0.0
  %126 = vmatprep.subr.mxu0 0.0
  %127 = vmatpush1.msra.mxu0 0.0
  %128 = vmatprep.subr.mxu0 0.0
  %129 = vmatpush1.msra.mxu0 0.0
  %130 = vmatprep.subr.mxu0 0.0
  %131 = vmatpush1.msra.mxu0 0.0
  %132 = vmatprep.subr.mxu0 0.0
  %133 = vmatpush1.msra.mxu0 0.0
  %134 = vmatprep.subr.mxu0 0.0
  %135 = vmatpush1.msra.mxu0 0.0
  %136 = vmatprep.subr.mxu0 0.0
  %137 = vmatpush1.msra.mxu0 0.0
  %138 = vmatprep.subr.mxu0 0.0
  %139 = vmatpush1.msra.mxu0 0.0
  %140 = vmatprep.subr.mxu0 0.0
  %141 = vmatpush1.msra.mxu0 0.0
  %142 = vmatprep.subr.mxu0 0.0
  %143 = vmatpush1.msra.mxu0 0.0
  %144 = vmatprep.subr.mxu0 0.0
  %145 = vmatpush1.msra.mxu0 0.0
  %146 = vmatprep.subr.mxu0 0.0
  %147 = vmatpush1.msra.mxu0 0.0
  %148 = vmatprep.subr.mxu0 0.0
  %149 = vmatpush1.msra.mxu0 0.0
  %150 = vmatprep.subr.mxu0 0.0
  %151 = vmatpush1.msra.mxu0 0.0
  %152 = vmatprep.subr.mxu0 0.0
  %153 = vmatpush1.msra.mxu0 0.0
  %154 = vmatprep.subr.mxu0 0.0
  %155 = vmatpush1.msra.mxu0 0.0
  %156 = vmatprep.subr.mxu0 0.0
  %157 = vmatpush1.msra.mxu0 0.0
  %158 = vmatprep.subr.mxu0 0.0
  %159 = vmatpush1.msra.mxu0 0.0
  %160 = vmatprep.subr.mxu0 0.0
  %161 = vmatpush1.msra.mxu0 0.0
  %162 = vmatprep.subr.mxu0 0.0
  %163 = vmatpush1.msra.mxu0 0.0
  %164 = vmatprep.subr.mxu0 0.0
  %165 = vmatpush1.msra.mxu0 0.0
  %166 = vmatprep.mubr.f32.mxu0 0.0
  %167 = vmatmul.mubr.f32.gmra.mrb[0].mxu0 %v29
  %v168 = vpop.f32.mrb[0].mxu0
  %v169 = vadd.f32 %v26, %v168
  %v170 = vpop.f32.mrb[0].mxu0
  %v171 = vadd.f32 %v26, %v170
  %172 = vdwg.mxu0
  %173 = vmatprep.subr.mxu0 %v16
  %174 = vmatpush1.msra.mxu0 %v15
  %175 = vmatprep.subr.mxu0 0.0
  %176 = vmatpush1.msra.mxu0 0.0
  %177 = vmatprep.subr.mxu0 0.0
  %178 = vmatpush1.msra.mxu0 0.0
  %179 = vmatprep.subr.mxu0 0.0
  %180 = vmatpush1.msra.mxu0 0.0
  %181 = vmatprep.subr.mxu0 0.0
  %182 = vmatpush1.msra.mxu0 0.0
  %183 = vmatprep.subr.mxu0 0.0
  %184 = vmatpush1.msra.mxu0 0.0
  %185 = vmatprep.subr.mxu0 0.0
  %186 = vmatpush1.msra.mxu0 0.0
  %187 = vmatprep.subr.mxu0 0.0
  %188 = vmatpush1.msra.mxu0 0.0
  %189 = vmatprep.subr.mxu0 0.0
  %190 = vmatpush1.msra.mxu0 0.0
  %191 = vmatprep.subr.mxu0 0.0
  %192 = vmatpush1.msra.mxu0 0.0
  %193 = vmatprep.subr.mxu0 0.0
  %194 = vmatpush1.msra.mxu0 0.0
  %195 = vmatprep.subr.mxu0 0.0
  %196 = vmatpush1.msra.mxu0 0.0
  %197 = vmatprep.subr.mxu0 0.0
  %198 = vmatpush1.msra.mxu0 0.0
  %199 = vmatprep.subr.mxu0 0.0
  %200 = vmatpush1.msra.mxu0 0.0
  %201 = vmatprep.subr.mxu0 0.0
  %202 = vmatpush1.msra.mxu0 0.0
  %203 = vmatprep.subr.mxu0 0.0
  %204 = vmatpush1.msra.mxu0 0.0
  %205 = vmatprep.subr.mxu0 0.0
  %206 = vmatpush1.msra.mxu0 0.0
  %207 = vmatprep.subr.mxu0 0.0
  %208 = vmatpush1.msra.mxu0 0.0
  %209 = vmatprep.subr.mxu0 0.0
  %210 = vmatpush1.msra.mxu0 0.0
  %211 = vmatprep.subr.mxu0 0.0
  %212 = vmatpush1.msra.mxu0 0.0
  %213 = vmatprep.subr.mxu0 0.0
  %214 = vmatpush1.msra.mxu0 0.0
  %215 = vmatprep.subr.mxu0 0.0
  %216 = vmatpush1.msra.mxu0 0.0
  %217 = vmatprep.subr.mxu0 0.0
  %218 = vmatpush1.msra.mxu0 0.0
  %219 = vmatprep.subr.mxu0 0.0
  %220 = vmatpush1.msra.mxu0 0.0
  %221 = vmatprep.subr.mxu0 0.0
  %222 = vmatpush1.msra.mxu0 0.0
  %223 = vmatprep.subr.mxu0 0.0
  %224 = vmatpush1.msra.mxu0 0.0
  %225 = vmatprep.subr.mxu0 0.0
  %226 = vmatpush1.msra.mxu0 0.0
  %227 = vmatprep.subr.mxu0 0.0
  %228 = vmatpush1.msra.mxu0 0.0
  %229 = vmatprep.subr.mxu0 0.0
  %230 = vmatpush1.msra.mxu0 0.0
  %231 = vmatprep.subr.mxu0 0.0
  %232 = vmatpush1.msra.mxu0 0.0
  %233 = vmatprep.subr.mxu0 0.0
  %234 = vmatpush1.msra.mxu0 0.0
  %235 = vmatprep.subr.mxu0 0.0
  %236 = vmatpush1.msra.mxu0 0.0
  %237 = vmatprep.mubr.f32.mxu0 0.0
  %238 = vmatmul.mubr.f32.gmra.mrb[0].mxu0 %v29
  %v239 = vpop.f32.mrb[0].mxu0
  %v240 = vadd.f32 %v26, %v239
  %v241 = vpop.f32.mrb[0].mxu0
  %v242 = vadd.f32 %v26, %v241
  %243 = vdwg.mxu0
  %244 = vmatprep.subr.mxu0 %v18
  %245 = vmatpush1.msra.mxu0 %v17
  %246 = vmatprep.subr.mxu0 0.0
  %247 = vmatpush1.msra.mxu0 0.0
  %248 = vmatprep.subr.mxu0 0.0
  %249 = vmatpush1.msra.mxu0 0.0
  %250 = vmatprep.subr.mxu0 0.0
  %251 = vmatpush1.msra.mxu0 0.0
  %252 = vmatprep.subr.mxu0 0.0
  %253 = vmatpush1.msra.mxu0 0.0
  %254 = vmatprep.subr.mxu0 0.0
  %255 = vmatpush1.msra.mxu0 0.0
  %256 = vmatprep.subr.mxu0 0.0
  %257 = vmatpush1.msra.mxu0 0.0
  %258 = vmatprep.subr.mxu0 0.0
  %259 = vmatpush1.msra.mxu0 0.0
  %260 = vmatprep.subr.mxu0 0.0
  %261 = vmatpush1.msra.mxu0 0.0
  %262 = vmatprep.subr.mxu0 0.0
  %263 = vmatpush1.msra.mxu0 0.0
  %264 = vmatprep.subr.mxu0 0.0
  %265 = vmatpush1.msra.mxu0 0.0
  %266 = vmatprep.subr.mxu0 0.0
  %267 = vmatpush1.msra.mxu0 0.0
  %268 = vmatprep.subr.mxu0 0.0
  %269 = vmatpush1.msra.mxu0 0.0
  %270 = vmatprep.subr.mxu0 0.0
  %271 = vmatpush1.msra.mxu0 0.0
  %272 = vmatprep.subr.mxu0 0.0
  %273 = vmatpush1.msra.mxu0 0.0
  %274 = vmatprep.subr.mxu0 0.0
  %275 = vmatpush1.msra.mxu0 0.0
  %276 = vmatprep.subr.mxu0 0.0
  %277 = vmatpush1.msra.mxu0 0.0
  %278 = vmatprep.subr.mxu0 0.0
  %279 = vmatpush1.msra.mxu0 0.0
  %280 = vmatprep.subr.mxu0 0.0
  %281 = vmatpush1.msra.mxu0 0.0
  %282 = vmatprep.subr.mxu0 0.0
  %283 = vmatpush1.msra.mxu0 0.0
  %284 = vmatprep.subr.mxu0 0.0
  %285 = vmatpush1.msra.mxu0 0.0
  %286 = vmatprep.subr.mxu0 0.0
  %287 = vmatpush1.msra.mxu0 0.0
  %288 = vmatprep.subr.mxu0 0.0
  %289 = vmatpush1.msra.mxu0 0.0
  %290 = vmatprep.subr.mxu0 0.0
  %291 = vmatpush1.msra.mxu0 0.0
  %292 = vmatprep.subr.mxu0 0.0
  %293 = vmatpush1.msra.mxu0 0.0
  %294 = vmatprep.subr.mxu0 0.0
  %295 = vmatpush1.msra.mxu0 0.0
  %296 = vmatprep.subr.mxu0 0.0
  %297 = vmatpush1.msra.mxu0 0.0
  %298 = vmatprep.subr.mxu0 0.0
  %299 = vmatpush1.msra.mxu0 0.0
  %300 = vmatprep.subr.mxu0 0.0
  %301 = vmatpush1.msra.mxu0 0.0
  %302 = vmatprep.subr.mxu0 0.0
  %303 = vmatpush1.msra.mxu0 0.0
  %304 = vmatprep.subr.mxu0 0.0
  %305 = vmatpush1.msra.mxu0 0.0
  %306 = vmatprep.subr.mxu0 0.0
  %307 = vmatpush1.msra.mxu0 0.0
  %308 = vmatprep.mubr.f32.mxu0 0.0
  %309 = vmatmul.mubr.f32.gmra.mrb[0].mxu0 %v29
  %v310 = vpop.f32.mrb[0].mxu0
  %v311 = vadd.f32 %v26, %v310
  %v312 = vpop.f32.mrb[0].mxu0
  %v313 = vadd.f32 %v26, %v312
  %314 = vdwg.mxu0
  %v315 = vmax.f32 %v98, 0.0
  %v316 = vmax.f32 %v100, 0.0
  %v317 = vmax.f32 %v169, 0.0
  %v318 = vmax.f32 %v171, 0.0
  %v319 = vmax.f32 %v240, 0.0
  %v320 = vmax.f32 %v242, 0.0
  %v321 = vmax.f32 %v311, 0.0
  %v322 = vmax.f32 %v313, 0.0
  %324 = vset.pattern.permute.xlu0 8
  %325 = vperm.xlu0 %324, %v20
  %v326 = vpop.permute.xlu0 %325
  %v328 = vsel %vm28, %v20, 0
  %330 = vmatprep.subr.mxu0 %v316
  %331 = vmatpush1.msra.mxu0 %v315
  %332 = vmatprep.subr.mxu0 0.0
  %333 = vmatpush1.msra.mxu0 0.0
  %334 = vmatprep.subr.mxu0 0.0
  %335 = vmatpush1.msra.mxu0 0.0
  %336 = vmatprep.subr.mxu0 0.0
  %337 = vmatpush1.msra.mxu0 0.0
  %338 = vmatprep.subr.mxu0 0.0
  %339 = vmatpush1.msra.mxu0 0.0
  %340 = vmatprep.subr.mxu0 0.0
  %341 = vmatpush1.msra.mxu0 0.0
  %342 = vmatprep.subr.mxu0 0.0
  %343 = vmatpush1.msra.mxu0 0.0
  %344 = vmatprep.subr.mxu0 0.0
  %345 = vmatpush1.msra.mxu0 0.0
  %346 = vmatprep.subr.mxu0 0.0
  %347 = vmatpush1.msra.mxu0 0.0
  %348 = vmatprep.subr.mxu0 0.0
  %349 = vmatpush1.msra.mxu0 0.0
  %350 = vmatprep.subr.mxu0 0.0
  %351 = vmatpush1.msra.mxu0 0.0
  %352 = vmatprep.subr.mxu0 0.0
  %353 = vmatpush1.msra.mxu0 0.0
  %354 = vmatprep.subr.mxu0 0.0
  %355 = vmatpush1.msra.mxu0 0.0
  %356 = vmatprep.subr.mxu0 0.0
  %357 = vmatpush1.msra.mxu0 0.0
  %358 = vmatprep.subr.mxu0 0.0
  %359 = vmatpush1.msra.mxu0 0.0
  %360 = vmatprep.subr.mxu0 0.0
  %361 = vmatpush1.msra.mxu0 0.0
  %362 = vmatprep.subr.mxu0 0.0
  %363 = vmatpush1.msra.mxu0 0.0
  %364 = vmatprep.subr.mxu0 0.0
  %365 = vmatpush1.msra.mxu0 0.0
  %366 = vmatprep.subr.mxu0 0.0
  %367 = vmatpush1.msra.mxu0 0.0
  %368 = vmatprep.subr.mxu0 0.0
  %369 = vmatpush1.msra.mxu0 0.0
  %370 = vmatprep.subr.mxu0 0.0
  %371 = vmatpush1.msra.mxu0 0.0
  %372 = vmatprep.subr.mxu0 0.0
  %373 = vmatpush1.msra.mxu0 0.0
  %374 = vmatprep.subr.mxu0 0.0
  %375 = vmatpush1.msra.mxu0 0.0
  %376 = vmatprep.subr.mxu0 0.0
  %377 = vmatpush1.msra.mxu0 0.0
  %378 = vmatprep.subr.mxu0 0.0
  %379 = vmatpush1.msra.mxu0 0.0
  %380 = vmatprep.subr.mxu0 0.0
  %381 = vmatpush1.msra.mxu0 0.0
  %382 = vmatprep.subr.mxu0 0.0
  %383 = vmatpush1.msra.mxu0 0.0
  %384 = vmatprep.subr.mxu0 0.0
  %385 = vmatpush1.msra.mxu0 0.0
  %386 = vmatprep.subr.mxu0 0.0
  %387 = vmatpush1.msra.mxu0 0.0
  %388 = vmatprep.subr.mxu0 0.0
  %389 = vmatpush1.msra.mxu0 0.0
  %390 = vmatprep.subr.mxu0 0.0
  %391 = vmatpush1.msra.mxu0 0.0
  %392 = vmatprep.subr.mxu0 0.0
  %393 = vmatpush1.msra.mxu0 0.0
  %394 = vmatprep.mubr.f32.mxu0 0.0
  %395 = vmatmul.mubr.f32.gmra.mrb[0].mxu0 %v328
  %v396 = vpop.f32.mrb[0].mxu0
  %v397 = vadd.f32 %v326, %v396
  %v398 = vpop.f32.mrb[0].mxu0
  %v399 = vadd.f32 %v326, %v398
  %400 = vdwg.mxu0
  %401 = vmatprep.subr.mxu0 %v318
  %402 = vmatpush1.msra.mxu0 %v317
  %403 = vmatprep.subr.mxu0 0.0
  %404 = vmatpush1.msra.mxu0 0.0
  %405 = vmatprep.subr.mxu0 0.0
  %406 = vmatpush1.msra.mxu0 0.0
  %407 = vmatprep.subr.mxu0 0.0
  %408 = vmatpush1.msra.mxu0 0.0
  %409 = vmatprep.subr.mxu0 0.0
  %410 = vmatpush1.msra.mxu0 0.0
  %411 = vmatprep.subr.mxu0 0.0
  %412 = vmatpush1.msra.mxu0 0.0
  %413 = vmatprep.subr.mxu0 0.0
  %414 = vmatpush1.msra.mxu0 0.0
  %415 = vmatprep.subr.mxu0 0.0
  %416 = vmatpush1.msra.mxu0 0.0
  %417 = vmatprep.subr.mxu0 0.0
  %418 = vmatpush1.msra.mxu0 0.0
  %419 = vmatprep.subr.mxu0 0.0
  %420 = vmatpush1.msra.mxu0 0.0
  %421 = vmatprep.subr.mxu0 0.0
  %422 = vmatpush1.msra.mxu0 0.0
  %423 = vmatprep.subr.mxu0 0.0
  %424 = vmatpush1.msra.mxu0 0.0
  %425 = vmatprep.subr.mxu0 0.0
  %426 = vmatpush1.msra.mxu0 0.0
  %427 = vmatprep.subr.mxu0 0.0
  %428 = vmatpush1.msra.mxu0 0.0
  %429 = vmatprep.subr.mxu0 0.0
  %430 = vmatpush1.msra.mxu0 0.0
  %431 = vmatprep.subr.mxu0 0.0
  %432 = vmatpush1.msra.mxu0 0.0
  %433 = vmatprep.subr.mxu0 0.0
  %434 = vmatpush1.msra.mxu0 0.0
  %435 = vmatprep.subr.mxu0 0.0
  %436 = vmatpush1.msra.mxu0 0.0
  %437 = vmatprep.subr.mxu0 0.0
  %438 = vmatpush1.msra.mxu0 0.0
  %439 = vmatprep.subr.mxu0 0.0
  %440 = vmatpush1.msra.mxu0 0.0
  %441 = vmatprep.subr.mxu0 0.0
  %442 = vmatpush1.msra.mxu0 0.0
  %443 = vmatprep.subr.mxu0 0.0
  %444 = vmatpush1.msra.mxu0 0.0
  %445 = vmatprep.subr.mxu0 0.0
  %446 = vmatpush1.msra.mxu0 0.0
  %447 = vmatprep.subr.mxu0 0.0
  %448 = vmatpush1.msra.mxu0 0.0
  %449 = vmatprep.subr.mxu0 0.0
  %450 = vmatpush1.msra.mxu0 0.0
  %451 = vmatprep.subr.mxu0 0.0
  %452 = vmatpush1.msra.mxu0 0.0
  %453 = vmatprep.subr.mxu0 0.0
  %454 = vmatpush1.msra.mxu0 0.0
  %455 = vmatprep.subr.mxu0 0.0
  %456 = vmatpush1.msra.mxu0 0.0
  %457 = vmatprep.subr.mxu0 0.0
  %458 = vmatpush1.msra.mxu0 0.0
  %459 = vmatprep.subr.mxu0 0.0
  %460 = vmatpush1.msra.mxu0 0.0
  %461 = vmatprep.subr.mxu0 0.0
  %462 = vmatpush1.msra.mxu0 0.0
  %463 = vmatprep.subr.mxu0 0.0
  %464 = vmatpush1.msra.mxu0 0.0
  %465 = vmatprep.mubr.f32.mxu0 0.0
  %466 = vmatmul.mubr.f32.gmra.mrb[0].mxu0 %v328
  %v467 = vpop.f32.mrb[0].mxu0
  %v468 = vadd.f32 %v326, %v467
  %v469 = vpop.f32.mrb[0].mxu0
  %v470 = vadd.f32 %v326, %v469
  %471 = vdwg.mxu0
  %472 = vmatprep.subr.mxu0 %v320
  %473 = vmatpush1.msra.mxu0 %v319
  %474 = vmatprep.subr.mxu0 0.0
  %475 = vmatpush1.msra.mxu0 0.0
  %476 = vmatprep.subr.mxu0 0.0
  %477 = vmatpush1.msra.mxu0 0.0
  %478 = vmatprep.subr.mxu0 0.0
  %479 = vmatpush1.msra.mxu0 0.0
  %480 = vmatprep.subr.mxu0 0.0
  %481 = vmatpush1.msra.mxu0 0.0
  %482 = vmatprep.subr.mxu0 0.0
  %483 = vmatpush1.msra.mxu0 0.0
  %484 = vmatprep.subr.mxu0 0.0
  %485 = vmatpush1.msra.mxu0 0.0
  %486 = vmatprep.subr.mxu0 0.0
  %487 = vmatpush1.msra.mxu0 0.0
  %488 = vmatprep.subr.mxu0 0.0
  %489 = vmatpush1.msra.mxu0 0.0
  %490 = vmatprep.subr.mxu0 0.0
  %491 = vmatpush1.msra.mxu0 0.0
  %492 = vmatprep.subr.mxu0 0.0
  %493 = vmatpush1.msra.mxu0 0.0
  %494 = vmatprep.subr.mxu0 0.0
  %495 = vmatpush1.msra.mxu0 0.0
  %496 = vmatprep.subr.mxu0 0.0
  %497 = vmatpush1.msra.mxu0 0.0
  %498 = vmatprep.subr.mxu0 0.0
  %499 = vmatpush1.msra.mxu0 0.0
  %500 = vmatprep.subr.mxu0 0.0
  %501 = vmatpush1.msra.mxu0 0.0
  %502 = vmatprep.subr.mxu0 0.0
  %503 = vmatpush1.msra.mxu0 0.0
  %504 = vmatprep.subr.mxu0 0.0
  %505 = vmatpush1.msra.mxu0 0.0
  %506 = vmatprep.subr.mxu0 0.0
  %507 = vmatpush1.msra.mxu0 0.0
  %508 = vmatprep.subr.mxu0 0.0
  %509 = vmatpush1.msra.mxu0 0.0
  %510 = vmatprep.subr.mxu0 0.0
  %511 = vmatpush1.msra.mxu0 0.0
  %512 = vmatprep.subr.mxu0 0.0
  %513 = vmatpush1.msra.mxu0 0.0
  %514 = vmatprep.subr.mxu0 0.0
  %515 = vmatpush1.msra.mxu0 0.0
  %516 = vmatprep.subr.mxu0 0.0
  %517 = vmatpush1.msra.mxu0 0.0
  %518 = vmatprep.subr.mxu0 0.0
  %519 = vmatpush1.msra.mxu0 0.0
  %520 = vmatprep.subr.mxu0 0.0
  %521 = vmatpush1.msra.mxu0 0.0
  %522 = vmatprep.subr.mxu0 0.0
  %523 = vmatpush1.msra.mxu0 0.0
  %524 = vmatprep.subr.mxu0 0.0
  %525 = vmatpush1.msra.mxu0 0.0
  %526 = vmatprep.subr.mxu0 0.0
  %527 = vmatpush1.msra.mxu0 0.0
  %528 = vmatprep.subr.mxu0 0.0
  %529 = vmatpush1.msra.mxu0 0.0
  %530 = vmatprep.subr.mxu0 0.0
  %531 = vmatpush1.msra.mxu0 0.0
  %532 = vmatprep.subr.mxu0 0.0
  %533 = vmatpush1.msra.mxu0 0.0
  %534 = vmatprep.subr.mxu0 0.0
  %535 = vmatpush1.msra.mxu0 0.0
  %536 = vmatprep.mubr.f32.mxu0 0.0
  %537 = vmatmul.mubr.f32.gmra.mrb[0].mxu0 %v328
  %v538 = vpop.f32.mrb[0].mxu0
  %v539 = vadd.f32 %v326, %v538
  %v540 = vpop.f32.mrb[0].mxu0
  %v541 = vadd.f32 %v326, %v540
  %542 = vdwg.mxu0
  %543 = vmatprep.subr.mxu0 %v322
  %544 = vmatpush1.msra.mxu0 %v321
  %545 = vmatprep.subr.mxu0 0.0
  %546 = vmatpush1.msra.mxu0 0.0
  %547 = vmatprep.subr.mxu0 0.0
  %548 = vmatpush1.msra.mxu0 0.0
  %549 = vmatprep.subr.mxu0 0.0
  %550 = vmatpush1.msra.mxu0 0.0
  %551 = vmatprep.subr.mxu0 0.0
  %552 = vmatpush1.msra.mxu0 0.0
  %553 = vmatprep.subr.mxu0 0.0
  %554 = vmatpush1.msra.mxu0 0.0
  %555 = vmatprep.subr.mxu0 0.0
  %556 = vmatpush1.msra.mxu0 0.0
  %557 = vmatprep.subr.mxu0 0.0
  %558 = vmatpush1.msra.mxu0 0.0
  %559 = vmatprep.subr.mxu0 0.0
  %560 = vmatpush1.msra.mxu0 0.0
  %561 = vmatprep.subr.mxu0 0.0
  %562 = vmatpush1.msra.mxu0 0.0
  %563 = vmatprep.subr.mxu0 0.0
  %564 = vmatpush1.msra.mxu0 0.0
  %565 = vmatprep.subr.mxu0 0.0
  %566 = vmatpush1.msra.mxu0 0.0
  %567 = vmatprep.subr.mxu0 0.0
  %568 = vmatpush1.msra.mxu0 0.0
  %569 = vmatprep.subr.mxu0 0.0
  %570 = vmatpush1.msra.mxu0 0.0
  %571 = vmatprep.subr.mxu0 0.0
  %572 = vmatpush1.msra.mxu0 0.0
  %573 = vmatprep.subr.mxu0 0.0
  %574 = vmatpush1.msra.mxu0 0.0
  %575 = vmatprep.subr.mxu0 0.0
  %576 = vmatpush1.msra.mxu0 0.0
  %577 = vmatprep.subr.mxu0 0.0
  %578 = vmatpush1.msra.mxu0 0.0
  %579 = vmatprep.subr.mxu0 0.0
  %580 = vmatpush1.msra.mxu0 0.0
  %581 = vmatprep.subr.mxu0 0.0
  %582 = vmatpush1.msra.mxu0 0.0
  %583 = vmatprep.subr.mxu0 0.0
  %584 = vmatpush1.msra.mxu0 0.0
  %585 = vmatprep.subr.mxu0 0.0
  %586 = vmatpush1.msra.mxu0 0.0
  %587 = vmatprep.subr.mxu0 0.0
  %588 = vmatpush1.msra.mxu0 0.0
  %589 = vmatprep.subr.mxu0 0.0
  %590 = vmatpush1.msra.mxu0 0.0
  %591 = vmatprep.subr.mxu0 0.0
  %592 = vmatpush1.msra.mxu0 0.0
  %593 = vmatprep.subr.mxu0 0.0
  %594 = vmatpush1.msra.mxu0 0.0
  %595 = vmatprep.subr.mxu0 0.0
  %596 = vmatpush1.msra.mxu0 0.0
  %597 = vmatprep.subr.mxu0 0.0
  %598 = vmatpush1.msra.mxu0 0.0
  %599 = vmatprep.subr.mxu0 0.0
  %600 = vmatpush1.msra.mxu0 0.0
  %601 = vmatprep.subr.mxu0 0.0
  %602 = vmatpush1.msra.mxu0 0.0
  %603 = vmatprep.subr.mxu0 0.0
  %604 = vmatpush1.msra.mxu0 0.0
  %605 = vmatprep.subr.mxu0 0.0
  %606 = vmatpush1.msra.mxu0 0.0
  %607 = vmatprep.mubr.f32.mxu0 0.0
  %608 = vmatmul.mubr.f32.gmra.mrb[0].mxu0 %v328
  %v609 = vpop.f32.mrb[0].mxu0
  %v610 = vadd.f32 %v326, %v609
  %v611 = vpop.f32.mrb[0].mxu0
  %v612 = vadd.f32 %v326, %v611
  %613 = vdwg.mxu0
  %v614 = vmax.f32 %v397, 0.0
  %v615 = vmax.f32 %v399, 0.0
  %v616 = vmax.f32 %v468, 0.0
  %v617 = vmax.f32 %v470, 0.0
  %v618 = vmax.f32 %v539, 0.0
  %v619 = vmax.f32 %v541, 0.0
  %v620 = vmax.f32 %v610, 0.0
  %v621 = vmax.f32 %v612, 0.0
  %623 = vset.pattern.permute.xlu0 8
  %624 = vperm.xlu0 %623, %v21
  %v625 = vpop.permute.xlu0 %624
  %v627 = vsel %vm28, %v21, 0
  %629 = vmatprep.subr.mxu0 %v615
  %630 = vmatpush1.msra.mxu0 %v614
  %631 = vmatprep.subr.mxu0 0.0
  %632 = vmatpush1.msra.mxu0 0.0
  %633 = vmatprep.subr.mxu0 0.0
  %634 = vmatpush1.msra.mxu0 0.0
  %635 = vmatprep.subr.mxu0 0.0
  %636 = vmatpush1.msra.mxu0 0.0
  %637 = vmatprep.subr.mxu0 0.0
  %638 = vmatpush1.msra.mxu0 0.0
  %639 = vmatprep.subr.mxu0 0.0
  %640 = vmatpush1.msra.mxu0 0.0
  %641 = vmatprep.subr.mxu0 0.0
  %642 = vmatpush1.msra.mxu0 0.0
  %643 = vmatprep.subr.mxu0 0.0
  %644 = vmatpush1.msra.mxu0 0.0
  %645 = vmatprep.subr.mxu0 0.0
  %646 = vmatpush1.msra.mxu0 0.0
  %647 = vmatprep.subr.mxu0 0.0
  %648 = vmatpush1.msra.mxu0 0.0
  %649 = vmatprep.subr.mxu0 0.0
  %650 = vmatpush1.msra.mxu0 0.0
  %651 = vmatprep.subr.mxu0 0.0
  %652 = vmatpush1.msra.mxu0 0.0
  %653 = vmatprep.subr.mxu0 0.0
  %654 = vmatpush1.msra.mxu0 0.0
  %655 = vmatprep.subr.mxu0 0.0
  %656 = vmatpush1.msra.mxu0 0.0
  %657 = vmatprep.subr.mxu0 0.0
  %658 = vmatpush1.msra.mxu0 0.0
  %659 = vmatprep.subr.mxu0 0.0
  %660 = vmatpush1.msra.mxu0 0.0
  %661 = vmatprep.subr.mxu0 0.0
  %662 = vmatpush1.msra.mxu0 0.0
  %663 = vmatprep.subr.mxu0 0.0
  %664 = vmatpush1.msra.mxu0 0.0
  %665 = vmatprep.subr.mxu0 0.0
  %666 = vmatpush1.msra.mxu0 0.0
  %667 = vmatprep.subr.mxu0 0.0
  %668 = vmatpush1.msra.mxu0 0.0
  %669 = vmatprep.subr.mxu0 0.0
  %670 = vmatpush1.msra.mxu0 0.0
  %671 = vmatprep.subr.mxu0 0.0
  %672 = vmatpush1.msra.mxu0 0.0
  %673 = vmatprep.subr.mxu0 0.0
  %674 = vmatpush1.msra.mxu0 0.0
  %675 = vmatprep.subr.mxu0 0.0
  %676 = vmatpush1.msra.mxu0 0.0
  %677 = vmatprep.subr.mxu0 0.0
  %678 = vmatpush1.msra.mxu0 0.0
  %679 = vmatprep.subr.mxu0 0.0
  %680 = vmatpush1.msra.mxu0 0.0
  %681 = vmatprep.subr.mxu0 0.0
  %682 = vmatpush1.msra.mxu0 0.0
  %683 = vmatprep.subr.mxu0 0.0
  %684 = vmatpush1.msra.mxu0 0.0
  %685 = vmatprep.subr.mxu0 0.0
  %686 = vmatpush1.msra.mxu0 0.0
  %687 = vmatprep.subr.mxu0 0.0
  %688 = vmatpush1.msra.mxu0 0.0
  %689 = vmatprep.subr.mxu0 0.0
  %690 = vmatpush1.msra.mxu0 0.0
  %691 = vmatprep.subr.mxu0 0.0
  %692 = vmatpush1.msra.mxu0 0.0
  %693 = vmatprep.mubr.f32.mxu0 0.0
  %694 = vmatmul.mubr.f32.gmra.mrb[0].mxu0 %v627
  %v695 = vpop.f32.mrb[0].mxu0
  %v696 = vadd.f32 %v625, %v695
  %v697 = vpop.f32.mrb[0].mxu0
  %v698 = vadd.f32 %v625, %v697
  %699 = vdwg.mxu0
  %700 = vmatprep.subr.mxu0 %v617
  %701 = vmatpush1.msra.mxu0 %v616
  %702 = vmatprep.subr.mxu0 0.0
  %703 = vmatpush1.msra.mxu0 0.0
  %704 = vmatprep.subr.mxu0 0.0
  %705 = vmatpush1.msra.mxu0 0.0
  %706 = vmatprep.subr.mxu0 0.0
  %707 = vmatpush1.msra.mxu0 0.0
  %708 = vmatprep.subr.mxu0 0.0
  %709 = vmatpush1.msra.mxu0 0.0
  %710 = vmatprep.subr.mxu0 0.0
  %711 = vmatpush1.msra.mxu0 0.0
  %712 = vmatprep.subr.mxu0 0.0
  %713 = vmatpush1.msra.mxu0 0.0
  %714 = vmatprep.subr.mxu0 0.0
  %715 = vmatpush1.msra.mxu0 0.0
  %716 = vmatprep.subr.mxu0 0.0
  %717 = vmatpush1.msra.mxu0 0.0
  %718 = vmatprep.subr.mxu0 0.0
  %719 = vmatpush1.msra.mxu0 0.0
  %720 = vmatprep.subr.mxu0 0.0
  %721 = vmatpush1.msra.mxu0 0.0
  %722 = vmatprep.subr.mxu0 0.0
  %723 = vmatpush1.msra.mxu0 0.0
  %724 = vmatprep.subr.mxu0 0.0
  %725 = vmatpush1.msra.mxu0 0.0
  %726 = vmatprep.subr.mxu0 0.0
  %727 = vmatpush1.msra.mxu0 0.0
  %728 = vmatprep.subr.mxu0 0.0
  %729 = vmatpush1.msra.mxu0 0.0
  %730 = vmatprep.subr.mxu0 0.0
  %731 = vmatpush1.msra.mxu0 0.0
  %732 = vmatprep.subr.mxu0 0.0
  %733 = vmatpush1.msra.mxu0 0.0
  %734 = vmatprep.subr.mxu0 0.0
  %735 = vmatpush1.msra.mxu0 0.0
  %736 = vmatprep.subr.mxu0 0.0
  %737 = vmatpush1.msra.mxu0 0.0
  %738 = vmatprep.subr.mxu0 0.0
  %739 = vmatpush1.msra.mxu0 0.0
  %740 = vmatprep.subr.mxu0 0.0
  %741 = vmatpush1.msra.mxu0 0.0
  %742 = vmatprep.subr.mxu0 0.0
  %743 = vmatpush1.msra.mxu0 0.0
  %744 = vmatprep.subr.mxu0 0.0
  %745 = vmatpush1.msra.mxu0 0.0
  %746 = vmatprep.subr.mxu0 0.0
  %747 = vmatpush1.msra.mxu0 0.0
  %748 = vmatprep.subr.mxu0 0.0
  %749 = vmatpush1.msra.mxu0 0.0
  %750 = vmatprep.subr.mxu0 0.0
  %751 = vmatpush1.msra.mxu0 0.0
  %752 = vmatprep.subr.mxu0 0.0
  %753 = vmatpush1.msra.mxu0 0.0
  %754 = vmatprep.subr.mxu0 0.0
  %755 = vmatpush1.msra.mxu0 0.0
  %756 = vmatprep.subr.mxu0 0.0
  %757 = vmatpush1.msra.mxu0 0.0
  %758 = vmatprep.subr.mxu0 0.0
  %759 = vmatpush1.msra.mxu0 0.0
  %760 = vmatprep.subr.mxu0 0.0
  %761 = vmatpush1.msra.mxu0 0.0
  %762 = vmatprep.subr.mxu0 0.0
  %763 = vmatpush1.msra.mxu0 0.0
  %764 = vmatprep.mubr.f32.mxu0 0.0
  %765 = vmatmul.mubr.f32.gmra.mrb[0].mxu0 %v627
  %v766 = vpop.f32.mrb[0].mxu0
  %v767 = vadd.f32 %v625, %v766
  %v768 = vpop.f32.mrb[0].mxu0
  %v769 = vadd.f32 %v625, %v768
  %770 = vdwg.mxu0
  %771 = vmatprep.subr.mxu0 %v619
  %772 = vmatpush1.msra.mxu0 %v618
  %773 = vmatprep.subr.mxu0 0.0
  %774 = vmatpush1.msra.mxu0 0.0
  %775 = vmatprep.subr.mxu0 0.0
  %776 = vmatpush1.msra.mxu0 0.0
  %777 = vmatprep.subr.mxu0 0.0
  %778 = vmatpush1.msra.mxu0 0.0
  %779 = vmatprep.subr.mxu0 0.0
  %780 = vmatpush1.msra.mxu0 0.0
  %781 = vmatprep.subr.mxu0 0.0
  %782 = vmatpush1.msra.mxu0 0.0
  %783 = vmatprep.subr.mxu0 0.0
  %784 = vmatpush1.msra.mxu0 0.0
  %785 = vmatprep.subr.mxu0 0.0
  %786 = vmatpush1.msra.mxu0 0.0
  %787 = vmatprep.subr.mxu0 0.0
  %788 = vmatpush1.msra.mxu0 0.0
  %789 = vmatprep.subr.mxu0 0.0
  %790 = vmatpush1.msra.mxu0 0.0
  %791 = vmatprep.subr.mxu0 0.0
  %792 = vmatpush1.msra.mxu0 0.0
  %793 = vmatprep.subr.mxu0 0.0
  %794 = vmatpush1.msra.mxu0 0.0
  %795 = vmatprep.subr.mxu0 0.0
  %796 = vmatpush1.msra.mxu0 0.0
  %797 = vmatprep.subr.mxu0 0.0
  %798 = vmatpush1.msra.mxu0 0.0
  %799 = vmatprep.subr.mxu0 0.0
  %800 = vmatpush1.msra.mxu0 0.0
  %801 = vmatprep.subr.mxu0 0.0
  %802 = vmatpush1.msra.mxu0 0.0
  %803 = vmatprep.subr.mxu0 0.0
  %804 = vmatpush1.msra.mxu0 0.0
  %805 = vmatprep.subr.mxu0 0.0
  %806 = vmatpush1.msra.mxu0 0.0
  %807 = vmatprep.subr.mxu0 0.0
  %808 = vmatpush1.msra.mxu0 0.0
  %809 = vmatprep.subr.mxu0 0.0
  %810 = vmatpush1.msra.mxu0 0.0
  %811 = vmatprep.subr.mxu0 0.0
  %812 = vmatpush1.msra.mxu0 0.0
  %813 = vmatprep.subr.mxu0 0.0
  %814 = vmatpush1.msra.mxu0 0.0
  %815 = vmatprep.subr.mxu0 0.0
  %816 = vmatpush1.msra.mxu0 0.0
  %817 = vmatprep.subr.mxu0 0.0
  %818 = vmatpush1.msra.mxu0 0.0
  %819 = vmatprep.subr.mxu0 0.0
  %820 = vmatpush1.msra.mxu0 0.0
  %821 = vmatprep.subr.mxu0 0.0
  %822 = vmatpush1.msra.mxu0 0.0
  %823 = vmatprep.subr.mxu0 0.0
  %824 = vmatpush1.msra.mxu0 0.0
  %825 = vmatprep.subr.mxu0 0.0
  %826 = vmatpush1.msra.mxu0 0.0
  %827 = vmatprep.subr.mxu0 0.0
  %828 = vmatpush1.msra.mxu0 0.0
  %829 = vmatprep.subr.mxu0 0.0
  %830 = vmatpush1.msra.mxu0 0.0
  %831 = vmatprep.subr.mxu0 0.0
  %832 = vmatpush1.msra.mxu0 0.0
  %833 = vmatprep.subr.mxu0 0.0
  %834 = vmatpush1.msra.mxu0 0.0
  %835 = vmatprep.mubr.f32.mxu0 0.0
  %836 = vmatmul.mubr.f32.gmra.mrb[0].mxu0 %v627
  %v837 = vpop.f32.mrb[0].mxu0
  %v838 = vadd.f32 %v625, %v837
  %v839 = vpop.f32.mrb[0].mxu0
  %v840 = vadd.f32 %v625, %v839
  %841 = vdwg.mxu0
  %842 = vmatprep.subr.mxu0 %v621
  %843 = vmatpush1.msra.mxu0 %v620
  %844 = vmatprep.subr.mxu0 0.0
  %845 = vmatpush1.msra.mxu0 0.0
  %846 = vmatprep.subr.mxu0 0.0
  %847 = vmatpush1.msra.mxu0 0.0
  %848 = vmatprep.subr.mxu0 0.0
  %849 = vmatpush1.msra.mxu0 0.0
  %850 = vmatprep.subr.mxu0 0.0
  %851 = vmatpush1.msra.mxu0 0.0
  %852 = vmatprep.subr.mxu0 0.0
  %853 = vmatpush1.msra.mxu0 0.0
  %854 = vmatprep.subr.mxu0 0.0
  %855 = vmatpush1.msra.mxu0 0.0
  %856 = vmatprep.subr.mxu0 0.0
  %857 = vmatpush1.msra.mxu0 0.0
  %858 = vmatprep.subr.mxu0 0.0
  %859 = vmatpush1.msra.mxu0 0.0
  %860 = vmatprep.subr.mxu0 0.0
  %861 = vmatpush1.msra.mxu0 0.0
  %862 = vmatprep.subr.mxu0 0.0
  %863 = vmatpush1.msra.mxu0 0.0
  %864 = vmatprep.subr.mxu0 0.0
  %865 = vmatpush1.msra.mxu0 0.0
  %866 = vmatprep.subr.mxu0 0.0
  %867 = vmatpush1.msra.mxu0 0.0
  %868 = vmatprep.subr.mxu0 0.0
  %869 = vmatpush1.msra.mxu0 0.0
  %870 = vmatprep.subr.mxu0 0.0
  %871 = vmatpush1.msra.mxu0 0.0
  %872 = vmatprep.subr.mxu0 0.0
  %873 = vmatpush1.msra.mxu0 0.0
  %874 = vmatprep.subr.mxu0 0.0
  %875 = vmatpush1.msra.mxu0 0.0
  %876 = vmatprep.subr.mxu0 0.0
  %877 = vmatpush1.msra.mxu0 0.0
  %878 = vmatprep.subr.mxu0 0.0
  %879 = vmatpush1.msra.mxu0 0.0
  %880 = vmatprep.subr.mxu0 0.0
  %881 = vmatpush1.msra.mxu0 0.0
  %882 = vmatprep.subr.mxu0 0.0
  %883 = vmatpush1.msra.mxu0 0.0
  %884 = vmatprep.subr.mxu0 0.0
  %885 = vmatpush1.msra.mxu0 0.0
  %886 = vmatprep.subr.mxu0 0.0
  %887 = vmatpush1.msra.mxu0 0.0
  %888 = vmatprep.subr.mxu0 0.0
  %889 = vmatpush1.msra.mxu0 0.0
  %890 = vmatprep.subr.mxu0 0.0
  %891 = vmatpush1.msra.mxu0 0.0
  %892 = vmatprep.subr.mxu0 0.0
  %893 = vmatpush1.msra.mxu0 0.0
  %894 = vmatprep.subr.mxu0 0.0
  %895 = vmatpush1.msra.mxu0 0.0
  %896 = vmatprep.subr.mxu0 0.0
  %897 = vmatpush1.msra.mxu0 0.0
  %898 = vmatprep.subr.mxu0 0.0
  %899 = vmatpush1.msra.mxu0 0.0
  %900 = vmatprep.subr.mxu0 0.0
  %901 = vmatpush1.msra.mxu0 0.0
  %902 = vmatprep.subr.mxu0 0.0
  %903 = vmatpush1.msra.mxu0 0.0
  %904 = vmatprep.subr.mxu0 0.0
  %905 = vmatpush1.msra.mxu0 0.0
  %906 = vmatprep.mubr.f32.mxu0 0.0
  %907 = vmatmul.mubr.f32.gmra.mrb[0].mxu0 %v627
  %v908 = vpop.f32.mrb[0].mxu0
  %v909 = vadd.f32 %v625, %v908
  %v910 = vpop.f32.mrb[0].mxu0
  %v911 = vadd.f32 %v625, %v910
  %912 = vdwg.mxu0
  %v913 = vmax.f32 %v696, 0.0
  %v914 = vmax.f32 %v698, 0.0
  %v915 = vmax.f32 %v767, 0.0
  %v916 = vmax.f32 %v769, 0.0
  %v917 = vmax.f32 %v838, 0.0
  %v918 = vmax.f32 %v840, 0.0
  %v919 = vmax.f32 %v909, 0.0
  %v920 = vmax.f32 %v911, 0.0
  %922 = vset.pattern.permute.xlu0 8
  %923 = vperm.xlu0 %922, %v22
  %v924 = vpop.permute.xlu0 %923
  %v926 = vsel %vm28, %v22, 0
  %928 = vmatprep.subr.mxu0 %v914
  %929 = vmatpush1.msra.mxu0 %v913
  %930 = vmatprep.subr.mxu0 0.0
  %931 = vmatpush1.msra.mxu0 0.0
  %932 = vmatprep.subr.mxu0 0.0
  %933 = vmatpush1.msra.mxu0 0.0
  %934 = vmatprep.subr.mxu0 0.0
  %935 = vmatpush1.msra.mxu0 0.0
  %936 = vmatprep.subr.mxu0 0.0
  %937 = vmatpush1.msra.mxu0 0.0
  %938 = vmatprep.subr.mxu0 0.0
  %939 = vmatpush1.msra.mxu0 0.0
  %940 = vmatprep.subr.mxu0 0.0
  %941 = vmatpush1.msra.mxu0 0.0
  %942 = vmatprep.subr.mxu0 0.0
  %943 = vmatpush1.msra.mxu0 0.0
  %944 = vmatprep.subr.mxu0 0.0
  %945 = vmatpush1.msra.mxu0 0.0
  %946 = vmatprep.subr.mxu0 0.0
  %947 = vmatpush1.msra.mxu0 0.0
  %948 = vmatprep.subr.mxu0 0.0
  %949 = vmatpush1.msra.mxu0 0.0
  %950 = vmatprep.subr.mxu0 0.0
  %951 = vmatpush1.msra.mxu0 0.0
  %952 = vmatprep.subr.mxu0 0.0
  %953 = vmatpush1.msra.mxu0 0.0
  %954 = vmatprep.subr.mxu0 0.0
  %955 = vmatpush1.msra.mxu0 0.0
  %956 = vmatprep.subr.mxu0 0.0
  %957 = vmatpush1.msra.mxu0 0.0
  %958 = vmatprep.subr.mxu0 0.0
  %959 = vmatpush1.msra.mxu0 0.0
  %960 = vmatprep.subr.mxu0 0.0
  %961 = vmatpush1.msra.mxu0 0.0
  %962 = vmatprep.subr.mxu0 0.0
  %963 = vmatpush1.msra.mxu0 0.0
  %964 = vmatprep.subr.mxu0 0.0
  %965 = vmatpush1.msra.mxu0 0.0
  %966 = vmatprep.subr.mxu0 0.0
  %967 = vmatpush1.msra.mxu0 0.0
  %968 = vmatprep.subr.mxu0 0.0
  %969 = vmatpush1.msra.mxu0 0.0
  %970 = vmatprep.subr.mxu0 0.0
  %971 = vmatpush1.msra.mxu0 0.0
  %972 = vmatprep.subr.mxu0 0.0
  %973 = vmatpush1.msra.mxu0 0.0
  %974 = vmatprep.subr.mxu0 0.0
  %975 = vmatpush1.msra.mxu0 0.0
  %976 = vmatprep.subr.mxu0 0.0
  %977 = vmatpush1.msra.mxu0 0.0
  %978 = vmatprep.subr.mxu0 0.0
  %979 = vmatpush1.msra.mxu0 0.0
  %980 = vmatprep.subr.mxu0 0.0
  %981 = vmatpush1.msra.mxu0 0.0
  %982 = vmatprep.subr.mxu0 0.0
  %983 = vmatpush1.msra.mxu0 0.0
  %984 = vmatprep.subr.mxu0 0.0
  %985 = vmatpush1.msra.mxu0 0.0
  %986 = vmatprep.subr.mxu0 0.0
  %987 = vmatpush1.msra.mxu0 0.0
  %988 = vmatprep.subr.mxu0 0.0
  %989 = vmatpush1.msra.mxu0 0.0
  %990 = vmatprep.subr.mxu0 0.0
  %991 = vmatpush1.msra.mxu0 0.0
  %992 = vmatprep.mubr.f32.mxu0 0.0
  %993 = vmatmul.mubr.f32.gmra.mrb[0].mxu0 %v926
  %v994 = vpop.f32.mrb[0].mxu0
  %v995 = vadd.f32 %v924, %v994
  %v996 = vpop.f32.mrb[0].mxu0
  %v997 = vadd.f32 %v924, %v996
  %998 = vdwg.mxu0
  %999 = vmatprep.subr.mxu0 %v916
  %1000 = vmatpush1.msra.mxu0 %v915
  %1001 = vmatprep.subr.mxu0 0.0
  %1002 = vmatpush1.msra.mxu0 0.0
  %1003 = vmatprep.subr.mxu0 0.0
  %1004 = vmatpush1.msra.mxu0 0.0
  %1005 = vmatprep.subr.mxu0 0.0
  %1006 = vmatpush1.msra.mxu0 0.0
  %1007 = vmatprep.subr.mxu0 0.0
  %1008 = vmatpush1.msra.mxu0 0.0
  %1009 = vmatprep.subr.mxu0 0.0
  %1010 = vmatpush1.msra.mxu0 0.0
  %1011 = vmatprep.subr.mxu0 0.0
  %1012 = vmatpush1.msra.mxu0 0.0
  %1013 = vmatprep.subr.mxu0 0.0
  %1014 = vmatpush1.msra.mxu0 0.0
  %1015 = vmatprep.subr.mxu0 0.0
  %1016 = vmatpush1.msra.mxu0 0.0
  %1017 = vmatprep.subr.mxu0 0.0
  %1018 = vmatpush1.msra.mxu0 0.0
  %1019 = vmatprep.subr.mxu0 0.0
  %1020 = vmatpush1.msra.mxu0 0.0
  %1021 = vmatprep.subr.mxu0 0.0
  %1022 = vmatpush1.msra.mxu0 0.0
  %1023 = vmatprep.subr.mxu0 0.0
  %1024 = vmatpush1.msra.mxu0 0.0
  %1025 = vmatprep.subr.mxu0 0.0
  %1026 = vmatpush1.msra.mxu0 0.0
  %1027 = vmatprep.subr.mxu0 0.0
  %1028 = vmatpush1.msra.mxu0 0.0
  %1029 = vmatprep.subr.mxu0 0.0
  %1030 = vmatpush1.msra.mxu0 0.0
  %1031 = vmatprep.subr.mxu0 0.0
  %1032 = vmatpush1.msra.mxu0 0.0
  %1033 = vmatprep.subr.mxu0 0.0
  %1034 = vmatpush1.msra.mxu0 0.0
  %1035 = vmatprep.subr.mxu0 0.0
  %1036 = vmatpush1.msra.mxu0 0.0
  %1037 = vmatprep.subr.mxu0 0.0
  %1038 = vmatpush1.msra.mxu0 0.0
  %1039 = vmatprep.subr.mxu0 0.0
  %1040 = vmatpush1.msra.mxu0 0.0
  %1041 = vmatprep.subr.mxu0 0.0
  %1042 = vmatpush1.msra.mxu0 0.0
  %1043 = vmatprep.subr.mxu0 0.0
  %1044 = vmatpush1.msra.mxu0 0.0
  %1045 = vmatprep.subr.mxu0 0.0
  %1046 = vmatpush1.msra.mxu0 0.0
  %1047 = vmatprep.subr.mxu0 0.0
  %1048 = vmatpush1.msra.mxu0 0.0
  %1049 = vmatprep.subr.mxu0 0.0
  %1050 = vmatpush1.msra.mxu0 0.0
  %1051 = vmatprep.subr.mxu0 0.0
  %1052 = vmatpush1.msra.mxu0 0.0
  %1053 = vmatprep.subr.mxu0 0.0
  %1054 = vmatpush1.msra.mxu0 0.0
  %1055 = vmatprep.subr.mxu0 0.0
  %1056 = vmatpush1.msra.mxu0 0.0
  %1057 = vmatprep.subr.mxu0 0.0
  %1058 = vmatpush1.msra.mxu0 0.0
  %1059 = vmatprep.subr.mxu0 0.0
  %1060 = vmatpush1.msra.mxu0 0.0
  %1061 = vmatprep.subr.mxu0 0.0
  %1062 = vmatpush1.msra.mxu0 0.0
  %1063 = vmatprep.mubr.f32.mxu0 0.0
  %1064 = vmatmul.mubr.f32.gmra.mrb[0].mxu0 %v926
  %v1065 = vpop.f32.mrb[0].mxu0
  %v1066 = vadd.f32 %v924, %v1065
  %v1067 = vpop.f32.mrb[0].mxu0
  %v1068 = vadd.f32 %v924, %v1067
  %1069 = vdwg.mxu0
  %1070 = vmatprep.subr.mxu0 %v918
  %1071 = vmatpush1.msra.mxu0 %v917
  %1072 = vmatprep.subr.mxu0 0.0
  %1073 = vmatpush1.msra.mxu0 0.0
  %1074 = vmatprep.subr.mxu0 0.0
  %1075 = vmatpush1.msra.mxu0 0.0
  %1076 = vmatprep.subr.mxu0 0.0
  %1077 = vmatpush1.msra.mxu0 0.0
  %1078 = vmatprep.subr.mxu0 0.0
  %1079 = vmatpush1.msra.mxu0 0.0
  %1080 = vmatprep.subr.mxu0 0.0
  %1081 = vmatpush1.msra.mxu0 0.0
  %1082 = vmatprep.subr.mxu0 0.0
  %1083 = vmatpush1.msra.mxu0 0.0
  %1084 = vmatprep.subr.mxu0 0.0
  %1085 = vmatpush1.msra.mxu0 0.0
  %1086 = vmatprep.subr.mxu0 0.0
  %1087 = vmatpush1.msra.mxu0 0.0
  %1088 = vmatprep.subr.mxu0 0.0
  %1089 = vmatpush1.msra.mxu0 0.0
  %1090 = vmatprep.subr.mxu0 0.0
  %1091 = vmatpush1.msra.mxu0 0.0
  %1092 = vmatprep.subr.mxu0 0.0
  %1093 = vmatpush1.msra.mxu0 0.0
  %1094 = vmatprep.subr.mxu0 0.0
  %1095 = vmatpush1.msra.mxu0 0.0
  %1096 = vmatprep.subr.mxu0 0.0
  %1097 = vmatpush1.msra.mxu0 0.0
  %1098 = vmatprep.subr.mxu0 0.0
  %1099 = vmatpush1.msra.mxu0 0.0
  %1100 = vmatprep.subr.mxu0 0.0
  %1101 = vmatpush1.msra.mxu0 0.0
  %1102 = vmatprep.subr.mxu0 0.0
  %1103 = vmatpush1.msra.mxu0 0.0
  %1104 = vmatprep.subr.mxu0 0.0
  %1105 = vmatpush1.msra.mxu0 0.0
  %1106 = vmatprep.subr.mxu0 0.0
  %1107 = vmatpush1.msra.mxu0 0.0
  %1108 = vmatprep.subr.mxu0 0.0
  %1109 = vmatpush1.msra.mxu0 0.0
  %1110 = vmatprep.subr.mxu0 0.0
  %1111 = vmatpush1.msra.mxu0 0.0
  %1112 = vmatprep.subr.mxu0 0.0
  %1113 = vmatpush1.msra.mxu0 0.0
  %1114 = vmatprep.subr.mxu0 0.0
  %1115 = vmatpush1.msra.mxu0 0.0
  %1116 = vmatprep.subr.mxu0 0.0
  %1117 = vmatpush1.msra.mxu0 0.0
  %1118 = vmatprep.subr.mxu0 0.0
  %1119 = vmatpush1.msra.mxu0 0.0
  %1120 = vmatprep.subr.mxu0 0.0
  %1121 = vmatpush1.msra.mxu0 0.0
  %1122 = vmatprep.subr.mxu0 0.0
  %1123 = vmatpush1.msra.mxu0 0.0
  %1124 = vmatprep.subr.mxu0 0.0
  %1125 = vmatpush1.msra.mxu0 0.0
  %1126 = vmatprep.subr.mxu0 0.0
  %1127 = vmatpush1.msra.mxu0 0.0
  %1128 = vmatprep.subr.mxu0 0.0
  %1129 = vmatpush1.msra.mxu0 0.0
  %1130 = vmatprep.subr.mxu0 0.0
  %1131 = vmatpush1.msra.mxu0 0.0
  %1132 = vmatprep.subr.mxu0 0.0
  %1133 = vmatpush1.msra.mxu0 0.0
  %1134 = vmatprep.mubr.f32.mxu0 0.0
  %1135 = vmatmul.mubr.f32.gmra.mrb[0].mxu0 %v926
  %v1136 = vpop.f32.mrb[0].mxu0
  %v1137 = vadd.f32 %v924, %v1136
  %v1138 = vpop.f32.mrb[0].mxu0
  %v1139 = vadd.f32 %v924, %v1138
  %1140 = vdwg.mxu0
  %1141 = vmatprep.subr.mxu0 %v920
  %1142 = vmatpush1.msra.mxu0 %v919
  %1143 = vmatprep.subr.mxu0 0.0
  %1144 = vmatpush1.msra.mxu0 0.0
  %1145 = vmatprep.subr.mxu0 0.0
  %1146 = vmatpush1.msra.mxu0 0.0
  %1147 = vmatprep.subr.mxu0 0.0
  %1148 = vmatpush1.msra.mxu0 0.0
  %1149 = vmatprep.subr.mxu0 0.0
  %1150 = vmatpush1.msra.mxu0 0.0
  %1151 = vmatprep.subr.mxu0 0.0
  %1152 = vmatpush1.msra.mxu0 0.0
  %1153 = vmatprep.subr.mxu0 0.0
  %1154 = vmatpush1.msra.mxu0 0.0
  %1155 = vmatprep.subr.mxu0 0.0
  %1156 = vmatpush1.msra.mxu0 0.0
  %1157 = vmatprep.subr.mxu0 0.0
  %1158 = vmatpush1.msra.mxu0 0.0
  %1159 = vmatprep.subr.mxu0 0.0
  %1160 = vmatpush1.msra.mxu0 0.0
  %1161 = vmatprep.subr.mxu0 0.0
  %1162 = vmatpush1.msra.mxu0 0.0
  %1163 = vmatprep.subr.mxu0 0.0
  %1164 = vmatpush1.msra.mxu0 0.0
  %1165 = vmatprep.subr.mxu0 0.0
  %1166 = vmatpush1.msra.mxu0 0.0
  %1167 = vmatprep.subr.mxu0 0.0
  %1168 = vmatpush1.msra.mxu0 0.0
  %1169 = vmatprep.subr.mxu0 0.0
  %1170 = vmatpush1.msra.mxu0 0.0
  %1171 = vmatprep.subr.mxu0 0.0
  %1172 = vmatpush1.msra.mxu0 0.0
  %1173 = vmatprep.subr.mxu0 0.0
  %1174 = vmatpush1.msra.mxu0 0.0
  %1175 = vmatprep.subr.mxu0 0.0
  %1176 = vmatpush1.msra.mxu0 0.0
  %1177 = vmatprep.subr.mxu0 0.0
  %1178 = vmatpush1.msra.mxu0 0.0
  %1179 = vmatprep.subr.mxu0 0.0
  %1180 = vmatpush1.msra.mxu0 0.0
  %1181 = vmatprep.subr.mxu0 0.0
  %1182 = vmatpush1.msra.mxu0 0.0
  %1183 = vmatprep.subr.mxu0 0.0
  %1184 = vmatpush1.msra.mxu0 0.0
  %1185 = vmatprep.subr.mxu0 0.0
  %1186 = vmatpush1.msra.mxu0 0.0
  %1187 = vmatprep.subr.mxu0 0.0
  %1188 = vmatpush1.msra.mxu0 0.0
  %1189 = vmatprep.subr.mxu0 0.0
  %1190 = vmatpush1.msra.mxu0 0.0
  %1191 = vmatprep.subr.mxu0 0.0
  %1192 = vmatpush1.msra.mxu0 0.0
  %1193 = vmatprep.subr.mxu0 0.0
  %1194 = vmatpush1.msra.mxu0 0.0
  %1195 = vmatprep.subr.mxu0 0.0
  %1196 = vmatpush1.msra.mxu0 0.0
  %1197 = vmatprep.subr.mxu0 0.0
  %1198 = vmatpush1.msra.mxu0 0.0
  %1199 = vmatprep.subr.mxu0 0.0
  %1200 = vmatpush1.msra.mxu0 0.0
  %1201 = vmatprep.subr.mxu0 0.0
  %1202 = vmatpush1.msra.mxu0 0.0
  %1203 = vmatprep.subr.mxu0 0.0
  %1204 = vmatpush1.msra.mxu0 0.0
  %1205 = vmatprep.mubr.f32.mxu0 0.0
  %1206 = vmatmul.mubr.f32.gmra.mrb[0].mxu0 %v926
  %v1207 = vpop.f32.mrb[0].mxu0
  %v1208 = vadd.f32 %v924, %v1207
  %v1209 = vpop.f32.mrb[0].mxu0
  %v1210 = vadd.f32 %v924, %v1209
  %1211 = vdwg.mxu0
  %1212 = vst [vmem:[%s2] sm:$0xff] %v995
  %1213 = vst [vmem:[%s2 + $0x8] sm:$0xff] %v997
  %1214 = vst [vmem:[%s2 + $0x10] sm:$0xff] %v1066
  %1215 = vst [vmem:[%s2 + $0x18] sm:$0xff] %v1068
  %1216 = vst [vmem:[%s2 + $0x20] sm:$0xff] %v1137
  %1217 = vst [vmem:[%s2 + $0x28] sm:$0xff] %v1139
  %1218 = vst [vmem:[%s2 + $0x30] sm:$0xff] %v1208
  %1219 = vst [vmem:[%s2 + $0x38] sm:$0xff] %v1210
  // Predicated region
  $region10: #{spiral_model_forward.1} parent=0 // pred_check
    _
  $region11: #{spiral_model_forward.1} parent=0 // pred_check_branch
    %1221 = sbr.rel (0) target = $region13
  $region12: #{spiral_model_forward.1} parent=0 // pred_region
    _
  $region13: #{spiral_model_forward.1} parent=0 // pred_fallthru
    _
  // Predicated region
  $region14: #{spiral_model_forward.1} parent=0 // pred_check
    _
  $region15: #{spiral_model_forward.1} parent=0 // pred_check_branch
    %1223 = sbr.rel (0) target = $region17
  $region16: #{spiral_model_forward.1} parent=0 // pred_region
    _
  $region17: #{spiral_model_forward.1} parent=0 // pred_fallthru
    _

</llo_original>
